<compile_context>
chip_gen: v6e
topology: v6e:2x2x1
jax: 0.10.0
libtpu: 0.0.40
codegen_flags: <defaults>
</compile_context>

<pallas_src>
import functools

import jax
import jax.numpy as jnp
from jax.experimental import pallas as pl
from jax.experimental.pallas import tpu as pltpu


def _round_up(x, m):
    return (x + m - 1) // m * m


def _cdiv(a, b):
    return (a + b - 1) // b


# --------------------------------------------------------------------------
# Kernel
# --------------------------------------------------------------------------
def _fpn_kernel(ew_ref, et_ref, el_ref, w1w_ref, w1t_ref, w1l_ref, b1_ref,
                wh_ref, bh_ref, out_ref, *, cubic):
    # ew/et/el: (tB, F*) bf16 per-group embed tiles
    # w1*     : (F*, Hp) bf16 row-splits of linear1   b1: (1, Hp) f32
    # wh      : (Hp, Np) bf16 fused [tran | rel] heads  bh: (1, Np) f32
    # out     : (tB, Np) bf16
    pre = jnp.dot(ew_ref[...], w1w_ref[...], preferred_element_type=jnp.float32)
    pre = pre + jnp.dot(et_ref[...], w1t_ref[...],
                        preferred_element_type=jnp.float32)
    pre = pre + jnp.dot(el_ref[...], w1l_ref[...],
                        preferred_element_type=jnp.float32)
    pre = pre + b1_ref[...]
    if cubic:
        act = pre * pre * pre
    else:
        act = jnp.tanh(pre)            # f32 on the EUP (v5e has no bf16 EUP)
    # TODO(synk): dropout_emb / dropout_hid omitted (eval-mode identity).
    out = jnp.dot(act.astype(wh_ref.dtype), wh_ref[...],
                  preferred_element_type=jnp.float32) + bh_ref[...]
    out_ref[...] = out.astype(out_ref.dtype)


# --------------------------------------------------------------------------
# Tiling / VMEM budget
# --------------------------------------------------------------------------
@functools.lru_cache(maxsize=1)
def _vmem_budget_bytes():
    """Generation-dependent scoped-VMEM budget."""
    try:
        vmem = int(getattr(pltpu.get_tpu_info(), "vmem_capacity_bytes",
                           128 << 20))
    except Exception:
        vmem = 128 << 20
    if vmem <= (64 << 20):        # v7x: 64 MiB per TensorCore -> stay well under
        return 40 << 20
    return 64 << 20               # v5e / v6e: 128 MiB physical VMEM


def _pick_block_b(F, Hp, Np, budget_bytes):
    """Largest 16-multiple batch tile whose VMEM footprint (counting Pallas'
    default double-buffering of every input/output, including the
    constant-index weights) fits 75% of the budget."""
    weight_bytes = 2 * (2 * (F * Hp + Hp * Np) + 4 * (Hp + Np))
    best = 16
    for cand in (16, 32, 64, 128, 256, 512, 1024):
        tile_bytes = (2 * cand * F * 2      # double-buffered bf16 embed tiles
                      + 2 * cand * Np * 2   # double-buffered bf16 out tiles
                      + 2 * cand * Hp * 4)  # live f32 pre/act intermediates
        if weight_bytes + tile_bytes <= int(budget_bytes * 0.75):
            best = cand
    return best


# --------------------------------------------------------------------------
# Parameter packing (one-time)
# --------------------------------------------------------------------------
def pack_fpn_params(params, group_sizes):
    """Pad H and the fused heads to 128 lanes, split w1 rows by embedding
    group, cast matmul operands (and embedding tables) to bf16; biases f32."""
    n_w, n_t, n_l = group_sizes
    E = params["emb_w"].shape[1]
    w1, b1 = params["w1"], params["b1"]
    wt, bt = params["w_tran"], params["b_tran"]
    wr, br = params["w_rel"], params["b_rel"]
    F, H = w1.shape
    T, R = wt.shape[1], wr.shape[1]
    Fw, Ft, Fl = n_w * E, n_t * E, n_l * E
    assert Fw + Ft + Fl == F
    Hp = _round_up(H, 128)
    Np = _round_up(T + R, 128)

    w1p = jnp.zeros((F, Hp), jnp.float32).at[:, :H].set(w1)
    b1p = jnp.zeros((1, Hp), jnp.float32).at[:, :H].set(b1)
    wh = jnp.zeros((Hp, Np), jnp.float32)
    wh = wh.at[:H, :T].set(wt).at[:H, T:T + R].set(wr)
    bh = jnp.zeros((1, Np), jnp.float32).at[:, :T].set(bt).at[:, T:T + R].set(br)

    return {
        # bf16 tables -> gather output is already bf16 (no separate cast pass)
        "emb_w": params["emb_w"].astype(jnp.bfloat16),
        "emb_t": params["emb_t"].astype(jnp.bfloat16),
        "emb_l": params["emb_l"].astype(jnp.bfloat16),
        "w1_w": w1p[:Fw].astype(jnp.bfloat16),
        "w1_t": w1p[Fw:Fw + Ft].astype(jnp.bfloat16),
        "w1_l": w1p[Fw + Ft:].astype(jnp.bfloat16),
        "b1": b1p,
        "w_heads": wh.astype(jnp.bfloat16),
        "b_heads": bh,
    }


# --------------------------------------------------------------------------
# Pallas wrapper
# --------------------------------------------------------------------------
def fpn_mlp(ew, et, el, w1w, w1t, w1l, b1, w_heads, b_heads, *,
            cubic=False, block_b=None):
    """Fused MLP head on per-group embed slabs -> (B, Np) bf16 logits slab."""
    B = ew.shape[0]
    Fw, Ft, Fl = ew.shape[1], et.shape[1], el.shape[1]
    F = Fw + Ft + Fl
    Hp = w1w.shape[1]
    Np = w_heads.shape[1]
    budget = _vmem_budget_bytes()

    if block_b is None:
        block_b = _pick_block_b(F, Hp, Np, budget)
    block_b = max(16, min(_round_up(block_b, 16), _round_up(B, 16)))
    nb = _cdiv(B, block_b)
    # Megacore: guarantee >= 2 grid steps so both v7x TensorCores get work
    # (costs only ~0.35 us extra on single-TC v5e/v6e).
    if nb < 2 and block_b > 16:
        block_b = _round_up(_cdiv(block_b, 2), 16)
        nb = _cdiv(B, block_b)

    cost = pl.CostEstimate(
        flops=2 * B * F * Hp + 2 * B * Hp * Np,
        transcendentals=0 if cubic else B * Hp,
        bytes_accessed=(B * F * 2 + B * Np * 2
                        + (F * Hp + Hp * Np) * 2 + (Hp + Np) * 4),
    )

    row = lambda i: (i, 0)       # batch-tiled operands
    const = lambda i: (0, 0)     # VMEM-resident weights / biases

    kernel = functools.partial(_fpn_kernel, cubic=cubic)
    out = pl.pallas_call(
        kernel,
        out_shape=jax.ShapeDtypeStruct((B, Np), jnp.bfloat16),
        grid_spec=pltpu.PrefetchScalarGridSpec(
            num_scalar_prefetch=0,
            grid=(nb,),
            in_specs=[
                pl.BlockSpec((block_b, Fw), row),
                pl.BlockSpec((block_b, Ft), row),
                pl.BlockSpec((block_b, Fl), row),
                pl.BlockSpec((Fw, Hp), const),
                pl.BlockSpec((Ft, Hp), const),
                pl.BlockSpec((Fl, Hp), const),
                pl.BlockSpec((1, Hp), const),
                pl.BlockSpec((Hp, Np), const),
                pl.BlockSpec((1, Np), const),
            ],
            out_specs=pl.BlockSpec((block_b, Np), row),
        ),
        compiler_params=pltpu.CompilerParams(
            dimension_semantics=("parallel",),
            vmem_limit_bytes=int(budget)),
        cost_estimate=cost,
    )(ew, et, el, w1w, w1t, w1l, b1, w_heads, b_heads)
    return out


def fpn_forward(packed, sw, st, sl, *, head_sizes, cubic=False, block_b=None):
    """Full FPN forward: per-group bf16 gathers (XLA) + fused Pallas MLP."""
    B = sw.shape[0]
    # Gathers read bf16 tables directly: each group hits HBM exactly once in
    # bf16 and is read exactly once by the kernel; no concat / cast / pad pass.
    # TODO(synk): fuse the gather itself into the kernel (scalar-prefetched
    # indices + VMEM-resident tables) to remove this remaining round-trip.
    ew = jnp.take(packed["emb_w"], sw, axis=0).reshape(B, -1)
    et = jnp.take(packed["emb_t"], st, axis=0).reshape(B, -1)
    el = jnp.take(packed["emb_l"], sl, axis=0).reshape(B, -1)
    out = fpn_mlp(ew, et, el, packed["w1_w"], packed["w1_t"], packed["w1_l"],
                  packed["b1"], packed["w_heads"], packed["b_heads"],
                  cubic=cubic, block_b=block_b)
    T, R = head_sizes
    logits = out[:, :T + R].astype(jnp.float32)
    return logits[:, :T], logits[:, T:]


# --------------------------------------------------------------------------
# Init (matches PyTorch defaults used by the module)
# --------------------------------------------------------------------------
def init_params(key, *, vocab_size, postag_size, rel_size, transit_size,
                embedding_dim, feature_size, hidden_dim, init_range=0.1):
    ks = jax.random.split(key, 9)
    u = lambda k, shape, r: jax.random.uniform(k, shape, jnp.float32, -r, r)
    in1 = feature_size * embedding_dim
    return {
        "emb_w": u(ks[0], (vocab_size, embedding_dim), init_range),
        "emb_t": u(ks[1], (postag_size, embedding_dim), init_range),
        "emb_l": u(ks[2], (rel_size, embedding_dim), init_range),
        # nn.Linear default init: U(-1/sqrt(fan_in), 1/sqrt(fan_in))
        "w1": u(ks[3], (in1, hidden_dim), 1.0 / jnp.sqrt(in1)),
        "b1": u(ks[4], (1, hidden_dim), 1.0 / jnp.sqrt(in1)),
        "w_tran": u(ks[5], (hidden_dim, transit_size), 1.0 / jnp.sqrt(hidden_dim)),
        "b_tran": u(ks[6], (1, transit_size), 1.0 / jnp.sqrt(hidden_dim)),
        "w_rel": u(ks[7], (hidden_dim, rel_size), 1.0 / jnp.sqrt(hidden_dim)),
        "b_rel": u(ks[8], (1, rel_size), 1.0 / jnp.sqrt(hidden_dim)),
    }


if __name__ == "__main__":
    # Small config consistent with the module's forward.
    vocab_size, postag_size, rel_size, transit_size = 100, 24, 16, 8
    embedding_dim, hidden_dim = 32, 64
    n_w, n_t, n_l = 8, 8, 4                       # tokens per feature group
    feature_size = n_w + n_t + n_l                # 20 -> F = 640
    batch = 56                                    # deliberately not tile-aligned

    key = jax.random.PRNGKey(0)
    pkey, kw, kt, kl = jax.random.split(key, 4)
    params = init_params(pkey,
                         vocab_size=vocab_size, postag_size=postag_size,
                         rel_size=rel_size, transit_size=transit_size,
                         embedding_dim=embedding_dim, feature_size=feature_size,
                         hidden_dim=hidden_dim, init_range=0.1)
    packed = pack_fpn_params(params, (n_w, n_t, n_l))

    sw = jax.random.randint(kw, (batch, n_w), 0, vocab_size)
    st = jax.random.randint(kt, (batch, n_t), 0, postag_size)
    sl = jax.random.randint(kl, (batch, n_l), 0, rel_size)

    fwd_tanh = jax.jit(functools.partial(
        fpn_forward, head_sizes=(transit_size, rel_size), cubic=False))
    fwd_cubic = jax.jit(functools.partial(
        fpn_forward, head_sizes=(transit_size, rel_size), cubic=True))

    lt, lr = fwd_tanh(packed, sw, st, sl)
    lt3, lr3 = fwd_cubic(packed, sw, st, sl)
    jax.block_until_ready((lt, lr, lt3, lr3))

    # f32 reference (eval-mode dropout = identity). Tolerance is loosened vs
    # 1e-5 because matmul operands / tables / output slab run in bf16 with f32
    # MXU accumulation.
    ew = jnp.take(params["emb_w"], sw, axis=0).reshape(batch, -1)
    et = jnp.take(params["emb_t"], st, axis=0).reshape(batch, -1)
    el = jnp.take(params["emb_l"], sl, axis=0).reshape(batch, -1)
    emb = jnp.concatenate((ew, et, el), axis=1)
    pre = emb @ params["w1"] + params["b1"]

    act = jnp.tanh(pre)
    ref_t = act @ params["w_tran"] + params["b_tran"]
    ref_r = act @ params["w_rel"] + params["b_rel"]
    assert lt.shape == (batch, transit_size) and lr.shape == (batch, rel_size)
    assert jnp.allclose(lt, ref_t, atol=2e-2, rtol=2e-2)
    assert jnp.allclose(lr, ref_r, atol=2e-2, rtol=2e-2)

    act3 = pre ** 3
    ref_t3 = act3 @ params["w_tran"] + params["b_tran"]
    ref_r3 = act3 @ params["w_rel"] + params["b_rel"]
    assert jnp.allclose(lt3, ref_t3, atol=2e-2, rtol=2e-2)
    assert jnp.allclose(lr3, ref_r3, atol=2e-2, rtol=2e-2)

    print("KERNEL_OK")
</pallas_src>

<mosaic_0001>
module attributes {stable_mosaic.version = 11 : i64} {
  func.func @_fpn_kernel(%arg0: i32, %arg1: memref<32x256xbf16, #tpu.memory_space<vmem>>, %arg2: memref<32x256xbf16, #tpu.memory_space<vmem>>, %arg3: memref<32x128xbf16, #tpu.memory_space<vmem>>, %arg4: memref<256x128xbf16, #tpu.memory_space<vmem>>, %arg5: memref<256x128xbf16, #tpu.memory_space<vmem>>, %arg6: memref<128x128xbf16, #tpu.memory_space<vmem>>, %arg7: memref<1x128xf32, #tpu.memory_space<vmem>>, %arg8: memref<128x128xbf16, #tpu.memory_space<vmem>>, %arg9: memref<1x128xf32, #tpu.memory_space<vmem>>, %arg10: memref<32x128xbf16, #tpu.memory_space<vmem>>) attributes {dimension_semantics = [#tpu.dimension_semantics<parallel>], iteration_bounds = array<i64: 2>, scalar_prefetch = 0 : i64, scratch_operands = 0 : i64, tpu.core_type = #tpu.core_type<tc>, window_params = [{transform_indices = @transform_0, window_bounds = array<i64: 32, 256>}, {transform_indices = @transform_1, window_bounds = array<i64: 32, 256>}, {transform_indices = @transform_2, window_bounds = array<i64: 32, 128>}, {pipeline_mode = #tpu.pipeline_mode<synchronous>, transform_indices = @transform_3, window_bounds = array<i64: 256, 128>}, {pipeline_mode = #tpu.pipeline_mode<synchronous>, transform_indices = @transform_4, window_bounds = array<i64: 256, 128>}, {pipeline_mode = #tpu.pipeline_mode<synchronous>, transform_indices = @transform_5, window_bounds = array<i64: 128, 128>}, {pipeline_mode = #tpu.pipeline_mode<synchronous>, transform_indices = @transform_6, window_bounds = array<i64: 1, 128>}, {pipeline_mode = #tpu.pipeline_mode<synchronous>, transform_indices = @transform_7, window_bounds = array<i64: 128, 128>}, {pipeline_mode = #tpu.pipeline_mode<synchronous>, transform_indices = @transform_8, window_bounds = array<i64: 1, 128>}, {transform_indices = @transform_9, window_bounds = array<i64: 32, 128>}]} {
    %c0 = arith.constant 0 : index
    %c0_0 = arith.constant 0 : index
    %0 = vector.load %arg1[%c0, %c0_0] : memref<32x256xbf16, #tpu.memory_space<vmem>>, vector<32x256xbf16>
    %c0_1 = arith.constant 0 : index
    %c0_2 = arith.constant 0 : index
    %1 = vector.load %arg4[%c0_1, %c0_2] : memref<256x128xbf16, #tpu.memory_space<vmem>>, vector<256x128xbf16>
    %cst = arith.constant dense<0.000000e+00> : vector<32x128xf32>
    %2 = tpu.matmul %0, %1, %cst {dimension_numbers = #tpu.dot_dimension_numbers<[1], [0], [0], [1], [0, 0, 1, 1], [], []>} : vector<32x256xbf16>, vector<256x128xbf16>, vector<32x128xf32> -> vector<32x128xf32>
    %c0_3 = arith.constant 0 : index
    %c0_4 = arith.constant 0 : index
    %3 = vector.load %arg2[%c0_3, %c0_4] : memref<32x256xbf16, #tpu.memory_space<vmem>>, vector<32x256xbf16>
    %c0_5 = arith.constant 0 : index
    %c0_6 = arith.constant 0 : index
    %4 = vector.load %arg5[%c0_5, %c0_6] : memref<256x128xbf16, #tpu.memory_space<vmem>>, vector<256x128xbf16>
    %cst_7 = arith.constant dense<0.000000e+00> : vector<32x128xf32>
    %5 = tpu.matmul %3, %4, %cst_7 {dimension_numbers = #tpu.dot_dimension_numbers<[1], [0], [0], [1], [0, 0, 1, 1], [], []>} : vector<32x256xbf16>, vector<256x128xbf16>, vector<32x128xf32> -> vector<32x128xf32>
    %6 = arith.addf %2, %5 : vector<32x128xf32>
    %c0_8 = arith.constant 0 : index
    %c0_9 = arith.constant 0 : index
    %7 = vector.load %arg3[%c0_8, %c0_9] : memref<32x128xbf16, #tpu.memory_space<vmem>>, vector<32x128xbf16>
    %c0_10 = arith.constant 0 : index
    %c0_11 = arith.constant 0 : index
    %8 = vector.load %arg6[%c0_10, %c0_11] : memref<128x128xbf16, #tpu.memory_space<vmem>>, vector<128x128xbf16>
    %cst_12 = arith.constant dense<0.000000e+00> : vector<32x128xf32>
    %9 = tpu.matmul %7, %8, %cst_12 {dimension_numbers = #tpu.dot_dimension_numbers<[1], [0], [0], [1], [0, 0, 1, 1], [], []>} : vector<32x128xbf16>, vector<128x128xbf16>, vector<32x128xf32> -> vector<32x128xf32>
    %10 = arith.addf %6, %9 : vector<32x128xf32>
    %c0_13 = arith.constant 0 : index
    %c0_14 = arith.constant 0 : index
    %11 = vector.load %arg7[%c0_13, %c0_14] : memref<1x128xf32, #tpu.memory_space<vmem>>, vector<1x128xf32>
    %12 = vector.broadcast %11 : vector<1x128xf32> to vector<32x128xf32>
    %13 = arith.addf %10, %12 : vector<32x128xf32>
    %14 = math.tanh %13 : vector<32x128xf32>
    %15 = arith.truncf %14 : vector<32x128xf32> to vector<32x128xbf16>
    %c0_15 = arith.constant 0 : index
    %c0_16 = arith.constant 0 : index
    %16 = vector.load %arg8[%c0_15, %c0_16] : memref<128x128xbf16, #tpu.memory_space<vmem>>, vector<128x128xbf16>
    %cst_17 = arith.constant dense<0.000000e+00> : vector<32x128xf32>
    %17 = tpu.matmul %15, %16, %cst_17 {dimension_numbers = #tpu.dot_dimension_numbers<[1], [0], [0], [1], [0, 0, 1, 1], [], []>} : vector<32x128xbf16>, vector<128x128xbf16>, vector<32x128xf32> -> vector<32x128xf32>
    %c0_18 = arith.constant 0 : index
    %c0_19 = arith.constant 0 : index
    %18 = vector.load %arg9[%c0_18, %c0_19] : memref<1x128xf32, #tpu.memory_space<vmem>>, vector<1x128xf32>
    %19 = vector.broadcast %18 : vector<1x128xf32> to vector<32x128xf32>
    %20 = arith.addf %17, %19 : vector<32x128xf32>
    %21 = arith.truncf %20 : vector<32x128xf32> to vector<32x128xbf16>
    %c0_20 = arith.constant 0 : index
    %c0_21 = arith.constant 0 : index
    %22 = vector.load %arg10[%c0_20, %c0_21] : memref<32x128xbf16, #tpu.memory_space<vmem>>, vector<32x128xbf16>
    tpu.vector_store %arg10[%c0_20, %c0_21], %21 {strides = array<i32>} : memref<32x128xbf16, #tpu.memory_space<vmem>>, vector<32x128xbf16>,
    return
  }
  func.func @transform_0(%arg0: i32) -> (i32, i32) {
    %c0_i32 = arith.constant 0 : i32
    %c0_i32_0 = arith.constant 0 : i32
    return %arg0, %c0_i32 : i32, i32
  }
  func.func @transform_1(%arg0: i32) -> (i32, i32) {
    %c0_i32 = arith.constant 0 : i32
    %c0_i32_0 = arith.constant 0 : i32
    return %arg0, %c0_i32 : i32, i32
  }
  func.func @transform_2(%arg0: i32) -> (i32, i32) {
    %c0_i32 = arith.constant 0 : i32
    %c0_i32_0 = arith.constant 0 : i32
    return %arg0, %c0_i32 : i32, i32
  }
  func.func @transform_3(%arg0: i32) -> (i32, i32) {
    %c0_i32 = arith.constant 0 : i32
    %c0_i32_0 = arith.constant 0 : i32
    %c0_i32_1 = arith.constant 0 : i32
    return %c0_i32, %c0_i32_0 : i32, i32
  }
  func.func @transform_4(%arg0: i32) -> (i32, i32) {
    %c0_i32 = arith.constant 0 : i32
    %c0_i32_0 = arith.constant 0 : i32
    %c0_i32_1 = arith.constant 0 : i32
    return %c0_i32, %c0_i32_0 : i32, i32
  }
  func.func @transform_5(%arg0: i32) -> (i32, i32) {
    %c0_i32 = arith.constant 0 : i32
    %c0_i32_0 = arith.constant 0 : i32
    %c0_i32_1 = arith.constant 0 : i32
    return %c0_i32, %c0_i32_0 : i32, i32
  }
  func.func @transform_6(%arg0: i32) -> (i32, i32) {
    %c0_i32 = arith.constant 0 : i32
    %c0_i32_0 = arith.constant 0 : i32
    %c0_i32_1 = arith.constant 0 : i32
    return %c0_i32, %c0_i32_0 : i32, i32
  }
  func.func @transform_7(%arg0: i32) -> (i32, i32) {
    %c0_i32 = arith.constant 0 : i32
    %c0_i32_0 = arith.constant 0 : i32
    %c0_i32_1 = arith.constant 0 : i32
    return %c0_i32, %c0_i32_0 : i32, i32
  }
  func.func @transform_8(%arg0: i32) -> (i32, i32) {
    %c0_i32 = arith.constant 0 : i32
    %c0_i32_0 = arith.constant 0 : i32
    %c0_i32_1 = arith.constant 0 : i32
    return %c0_i32, %c0_i32_0 : i32, i32
  }
  func.func @transform_9(%arg0: i32) -> (i32, i32) {
    %c0_i32 = arith.constant 0 : i32
    %c0_i32_0 = arith.constant 0 : i32
    return %arg0, %c0_i32 : i32, i32
  }
}

</mosaic_0001>

<llo_original>
// kernel: fpn_forward.1
$region0: #{fpn_forward.1}
  #allocation0 [shape = 'u32[]', space=smem, size = 0x4, offset = 0x4, fixed_abs, tag = 'smem constant byte address 0x4 - core index']
  #allocation1 [shape = 'u32[144,128]{1,0:T(1,128)}', space=vmem, size = 0x12000, scoped, tag = 'internal scratch']
  %s0 = inlined_call_operand.vmem [shape: bf16[56,256], index: 0, kind: input, shape index: {}]
  %s1 = inlined_call_operand.vmem [shape: bf16[56,256], index: 1, kind: input, shape index: {}]
  %s2 = inlined_call_operand.vmem [shape: bf16[56,128], index: 2, kind: input, shape index: {}]
  %s3 = inlined_call_operand.vmem [shape: bf16[256,128], index: 3, kind: input, shape index: {}]
  %s4 = inlined_call_operand.vmem [shape: bf16[256,128], index: 4, kind: input, shape index: {}]
  %s5 = inlined_call_operand.vmem [shape: bf16[128,128], index: 5, kind: input, shape index: {}]
  %s6 = inlined_call_operand.vmem [shape: f32[1,128], index: 6, kind: input, shape index: {}]
  %s7 = inlined_call_operand.vmem [shape: bf16[128,128], index: 7, kind: input, shape index: {}]
  %s8 = inlined_call_operand.vmem [shape: f32[1,128], index: 8, kind: input, shape index: {}]
  %s9 = inlined_call_operand.vmem [shape: bf16[56,128], index: 9, kind: output, shape index: {}]
  %s10 = sld [smem:[#allocation0]]
  $region113: #{fpn_forward.1} parent=0
    _
  %s12 = ssub.s32 1, %s10
  %s13 = scalar_select 0, %s12, %s10
  $region1: #{fpn_forward.1} parent=0
    #allocation2 [shape = 'u8[16384]{0}', space=vmem, size = 0x4000, scoped, tag = 'output window, operand 0']
    loop: start=0, step=1, limit=4
    $region2: #{fpn_forward.1} parent=1 // loop_pre_header
      _
    $region3: #{fpn_forward.1} parent=1 // loop_header
      %s15 = sphi 0, %s19
      %p16 = scmp.ge.s32.totalorder %s15, 4
      %s25 = sphi 0, %s27
      %s28 = sphi 0, %s25
      %s29 = sphi 0, %s28
      %s45 = sphi 0, %s29
      %s51 = sphi 0, %s53
      %s54 = sphi 0, %s51
      %s55 = sphi 0, %s54
      %s71 = sphi 0, %s55
      %s77 = sphi 0, %s79
      %s80 = sphi 0, %s77
      %s81 = sphi 0, %s80
      %s97 = sphi 0, %s81
      %s101 = sphi 0, %s101
      %s103 = sphi 0, %s101
      %s104 = sphi 0, %s103
      %s118 = sphi 0, %s104
      %s122 = sphi 0, %s122
      %s124 = sphi 0, %s122
      %s125 = sphi 0, %s124
      %s139 = sphi 0, %s125
      %s143 = sphi 0, %s143
      %s145 = sphi 0, %s143
      %s146 = sphi 0, %s145
      %s160 = sphi 0, %s146
      %s164 = sphi 0, %s164
      %s166 = sphi 0, %s164
      %s167 = sphi 0, %s166
      %s181 = sphi 0, %s167
      %s185 = sphi 0, %s185
      %s187 = sphi 0, %s185
      %s188 = sphi 0, %s187
      %s202 = sphi 0, %s188
      %s206 = sphi 0, %s206
      %s208 = sphi 0, %s206
      %s209 = sphi 0, %s208
      %s223 = sphi 0, %s209
      %s229 = sphi 0, %s231
      %s232 = sphi 0, %s229
      %s233 = sphi 0, %s232
      %s249 = sphi 0, %s233
    $region4: #{fpn_forward.1} parent=1 // loop_header_branch
      %18 = sbr.rel (%p16) target = $region8
    $region5: #{fpn_forward.1} parent=1 // loop_body
      %s20 = ssub.s32 %s15, 1
      %s21 = ssub.s32 %s15, 2
      %s22 = sadd.s32 %s15, 1
      %s23 = ssub.s32 %s15, %s22
      %p24 = scmp.eq.s32.totalorder %s23, 0
      %s26 = sadd.s32 %s25, 1
      %s27 = scalar_select %p24, %s25, %s26
      %p30 = pneg %p24
      %p31 = scmp.eq.s32.totalorder %s15, 1
      %p32 = por %p30, %p31
      %p33 = scmp.ne.s32.totalorder %s25, %s28
      %p34 = scmp.eq.s32.totalorder %s15, 0
      %p35 = por %p33, %p34
      %p36 = scmp.ne.s32.totalorder %s25, %s28
      %p37 = scmp.eq.s32.totalorder %s20, 1
      %p38 = por %p36, %p37
      %p39 = scmp.ne.s32.totalorder %s28, %s29
      %p40 = scmp.eq.s32.totalorder %s20, 0
      %p41 = por %p39, %p40
      %p42 = scmp.ne.s32.totalorder %s28, %s29
      %p43 = scmp.eq.s32.totalorder %s21, 1
      %p44 = por %p42, %p43
      %p46 = scmp.ne.s32.totalorder %s29, %s45
      %p47 = scmp.eq.s32.totalorder %s21, 0
      %p48 = por %p46, %p47
      %s49 = ssub.s32 %s15, %s22
      %p50 = scmp.eq.s32.totalorder %s49, 0
      %s52 = sadd.s32 %s51, 1
      %s53 = scalar_select %p50, %s51, %s52
      %p56 = pneg %p50
      %p57 = scmp.eq.s32.totalorder %s15, 1
      %p58 = por %p56, %p57
      %p59 = scmp.ne.s32.totalorder %s51, %s54
      %p60 = scmp.eq.s32.totalorder %s15, 0
      %p61 = por %p59, %p60
      %p62 = scmp.ne.s32.totalorder %s51, %s54
      %p63 = scmp.eq.s32.totalorder %s20, 1
      %p64 = por %p62, %p63
      %p65 = scmp.ne.s32.totalorder %s54, %s55
      %p66 = scmp.eq.s32.totalorder %s20, 0
      %p67 = por %p65, %p66
      %p68 = scmp.ne.s32.totalorder %s54, %s55
      %p69 = scmp.eq.s32.totalorder %s21, 1
      %p70 = por %p68, %p69
      %p72 = scmp.ne.s32.totalorder %s55, %s71
      %p73 = scmp.eq.s32.totalorder %s21, 0
      %p74 = por %p72, %p73
      %s75 = ssub.s32 %s15, %s22
      %p76 = scmp.eq.s32.totalorder %s75, 0
      %s78 = sadd.s32 %s77, 1
      %s79 = scalar_select %p76, %s77, %s78
      %p82 = pneg %p76
      %p83 = scmp.eq.s32.totalorder %s15, 1
      %p84 = por %p82, %p83
      %p85 = scmp.ne.s32.totalorder %s77, %s80
      %p86 = scmp.eq.s32.totalorder %s15, 0
      %p87 = por %p85, %p86
      %p88 = scmp.ne.s32.totalorder %s77, %s80
      %p89 = scmp.eq.s32.totalorder %s20, 1
      %p90 = por %p88, %p89
      %p91 = scmp.ne.s32.totalorder %s80, %s81
      %p92 = scmp.eq.s32.totalorder %s20, 0
      %p93 = por %p91, %p92
      %p94 = scmp.ne.s32.totalorder %s80, %s81
      %p95 = scmp.eq.s32.totalorder %s21, 1
      %p96 = por %p94, %p95
      %p98 = scmp.ne.s32.totalorder %s81, %s97
      %p99 = scmp.eq.s32.totalorder %s21, 0
      %p100 = por %p98, %p99
      %s102 = sadd.s32 %s101, 1
      %p105 = scmp.eq.s32.totalorder %s15, 1
      %p106 = scmp.ne.s32.totalorder %s101, %s103
      %p107 = scmp.eq.s32.totalorder %s15, 0
      %p108 = por %p106, %p107
      %p109 = scmp.ne.s32.totalorder %s101, %s103
      %p110 = scmp.eq.s32.totalorder %s20, 1
      %p111 = por %p109, %p110
      %p112 = scmp.ne.s32.totalorder %s103, %s104
      %p113 = scmp.eq.s32.totalorder %s20, 0
      %p114 = por %p112, %p113
      %p115 = scmp.ne.s32.totalorder %s103, %s104
      %p116 = scmp.eq.s32.totalorder %s21, 1
      %p117 = por %p115, %p116
      %p119 = scmp.ne.s32.totalorder %s104, %s118
      %p120 = scmp.eq.s32.totalorder %s21, 0
      %p121 = por %p119, %p120
      %s123 = sadd.s32 %s122, 1
      %p126 = scmp.eq.s32.totalorder %s15, 1
      %p127 = scmp.ne.s32.totalorder %s122, %s124
      %p128 = scmp.eq.s32.totalorder %s15, 0
      %p129 = por %p127, %p128
      %p130 = scmp.ne.s32.totalorder %s122, %s124
      %p131 = scmp.eq.s32.totalorder %s20, 1
      %p132 = por %p130, %p131
      %p133 = scmp.ne.s32.totalorder %s124, %s125
      %p134 = scmp.eq.s32.totalorder %s20, 0
      %p135 = por %p133, %p134
      %p136 = scmp.ne.s32.totalorder %s124, %s125
      %p137 = scmp.eq.s32.totalorder %s21, 1
      %p138 = por %p136, %p137
      %p140 = scmp.ne.s32.totalorder %s125, %s139
      %p141 = scmp.eq.s32.totalorder %s21, 0
      %p142 = por %p140, %p141
      %s144 = sadd.s32 %s143, 1
      %p147 = scmp.eq.s32.totalorder %s15, 1
      %p148 = scmp.ne.s32.totalorder %s143, %s145
      %p149 = scmp.eq.s32.totalorder %s15, 0
      %p150 = por %p148, %p149
      %p151 = scmp.ne.s32.totalorder %s143, %s145
      %p152 = scmp.eq.s32.totalorder %s20, 1
      %p153 = por %p151, %p152
      %p154 = scmp.ne.s32.totalorder %s145, %s146
      %p155 = scmp.eq.s32.totalorder %s20, 0
      %p156 = por %p154, %p155
      %p157 = scmp.ne.s32.totalorder %s145, %s146
      %p158 = scmp.eq.s32.totalorder %s21, 1
      %p159 = por %p157, %p158
      %p161 = scmp.ne.s32.totalorder %s146, %s160
      %p162 = scmp.eq.s32.totalorder %s21, 0
      %p163 = por %p161, %p162
      %s165 = sadd.s32 %s164, 1
      %p168 = scmp.eq.s32.totalorder %s15, 1
      %p169 = scmp.ne.s32.totalorder %s164, %s166
      %p170 = scmp.eq.s32.totalorder %s15, 0
      %p171 = por %p169, %p170
      %p172 = scmp.ne.s32.totalorder %s164, %s166
      %p173 = scmp.eq.s32.totalorder %s20, 1
      %p174 = por %p172, %p173
      %p175 = scmp.ne.s32.totalorder %s166, %s167
      %p176 = scmp.eq.s32.totalorder %s20, 0
      %p177 = por %p175, %p176
      %p178 = scmp.ne.s32.totalorder %s166, %s167
      %p179 = scmp.eq.s32.totalorder %s21, 1
      %p180 = por %p178, %p179
      %p182 = scmp.ne.s32.totalorder %s167, %s181
      %p183 = scmp.eq.s32.totalorder %s21, 0
      %p184 = por %p182, %p183
      %s186 = sadd.s32 %s185, 1
      %p189 = scmp.eq.s32.totalorder %s15, 1
      %p190 = scmp.ne.s32.totalorder %s185, %s187
      %p191 = scmp.eq.s32.totalorder %s15, 0
      %p192 = por %p190, %p191
      %p193 = scmp.ne.s32.totalorder %s185, %s187
      %p194 = scmp.eq.s32.totalorder %s20, 1
      %p195 = por %p193, %p194
      %p196 = scmp.ne.s32.totalorder %s187, %s188
      %p197 = scmp.eq.s32.totalorder %s20, 0
      %p198 = por %p196, %p197
      %p199 = scmp.ne.s32.totalorder %s187, %s188
      %p200 = scmp.eq.s32.totalorder %s21, 1
      %p201 = por %p199, %p200
      %p203 = scmp.ne.s32.totalorder %s188, %s202
      %p204 = scmp.eq.s32.totalorder %s21, 0
      %p205 = por %p203, %p204
      %s207 = sadd.s32 %s206, 1
      %p210 = scmp.eq.s32.totalorder %s15, 1
      %p211 = scmp.ne.s32.totalorder %s206, %s208
      %p212 = scmp.eq.s32.totalorder %s15, 0
      %p213 = por %p211, %p212
      %p214 = scmp.ne.s32.totalorder %s206, %s208
      %p215 = scmp.eq.s32.totalorder %s20, 1
      %p216 = por %p214, %p215
      %p217 = scmp.ne.s32.totalorder %s208, %s209
      %p218 = scmp.eq.s32.totalorder %s20, 0
      %p219 = por %p217, %p218
      %p220 = scmp.ne.s32.totalorder %s208, %s209
      %p221 = scmp.eq.s32.totalorder %s21, 1
      %p222 = por %p220, %p221
      %p224 = scmp.ne.s32.totalorder %s209, %s223
      %p225 = scmp.eq.s32.totalorder %s21, 0
      %p226 = por %p224, %p225
      %s227 = ssub.s32 %s15, %s22
      %p228 = scmp.eq.s32.totalorder %s227, 0
      %s230 = sadd.s32 %s229, 1
      %s231 = scalar_select %p228, %s229, %s230
      %p234 = pneg %p228
      %p235 = scmp.eq.s32.totalorder %s15, 1
      %p236 = por %p234, %p235
      %p237 = scmp.ne.s32.totalorder %s229, %s232
      %p238 = scmp.eq.s32.totalorder %s15, 0
      %p239 = por %p237, %p238
      %p240 = scmp.ne.s32.totalorder %s229, %s232
      %p241 = scmp.eq.s32.totalorder %s20, 1
      %p242 = por %p240, %p241
      %p243 = scmp.ne.s32.totalorder %s232, %s233
      %p244 = scmp.eq.s32.totalorder %s20, 0
      %p245 = por %p243, %p244
      %p246 = scmp.ne.s32.totalorder %s232, %s233
      %p247 = scmp.eq.s32.totalorder %s21, 1
      %p248 = por %p246, %p247
      %p250 = scmp.ne.s32.totalorder %s233, %s249
      %p251 = scmp.eq.s32.totalorder %s21, 0
      %p252 = por %p250, %p251
      %p253 = scmp.le.s32.totalorder 1, %s15
      %p254 = scmp.lt.s32.totalorder %s15, 3
      %p255 = pnand %p253, %p254
      %p256 = pneg %p255
      // Predicated region
      $region9: #{fpn_forward.1} parent=5 // pred_check
        _
      $region10: #{fpn_forward.1} parent=5 // pred_check_branch
        %258 = sbr.rel (%p255) target = $region12
      $region11: #{fpn_forward.1} parent=5 // pred_region
        %s259 = ssub.s32 %s15, 1
        // Predicated region
        $region13: #{fpn_forward.1} parent=11 // pred_check
          %p260 = pneg %p114
        $region14: #{fpn_forward.1} parent=11 // pred_check_branch
          %262 = sbr.rel (%p260) target = $region16
        $region15: #{fpn_forward.1} parent=11 // pred_region
          _
        $region16: #{fpn_forward.1} parent=11 // pred_fallthru
          _
        // Predicated region
        $region17: #{fpn_forward.1} parent=11 // pred_check
          %p263 = pneg %p135
        $region18: #{fpn_forward.1} parent=11 // pred_check_branch
          %265 = sbr.rel (%p263) target = $region20
        $region19: #{fpn_forward.1} parent=11 // pred_region
          _
        $region20: #{fpn_forward.1} parent=11 // pred_fallthru
          _
        // Predicated region
        $region21: #{fpn_forward.1} parent=11 // pred_check
          %p266 = pneg %p156
        $region22: #{fpn_forward.1} parent=11 // pred_check_branch
          %268 = sbr.rel (%p266) target = $region24
        $region23: #{fpn_forward.1} parent=11 // pred_region
          _
        $region24: #{fpn_forward.1} parent=11 // pred_fallthru
          _
        // Predicated region
        $region25: #{fpn_forward.1} parent=11 // pred_check
          %p269 = pneg %p177
        $region26: #{fpn_forward.1} parent=11 // pred_check_branch
          %271 = sbr.rel (%p269) target = $region28
        $region27: #{fpn_forward.1} parent=11 // pred_region
          _
        $region28: #{fpn_forward.1} parent=11 // pred_fallthru
          _
        // Predicated region
        $region29: #{fpn_forward.1} parent=11 // pred_check
          %p272 = pneg %p198
        $region30: #{fpn_forward.1} parent=11 // pred_check_branch
          %274 = sbr.rel (%p272) target = $region32
        $region31: #{fpn_forward.1} parent=11 // pred_region
          _
        $region32: #{fpn_forward.1} parent=11 // pred_fallthru
          _
        // Predicated region
        $region33: #{fpn_forward.1} parent=11 // pred_check
          %p275 = pneg %p219
        $region34: #{fpn_forward.1} parent=11 // pred_check_branch
          %277 = sbr.rel (%p275) target = $region36
        $region35: #{fpn_forward.1} parent=11 // pred_region
          _
        $region36: #{fpn_forward.1} parent=11 // pred_fallthru
          _
      $region12: #{fpn_forward.1} parent=5 // pred_fallthru
        _
      %p278 = scmp.lt.s32.totalorder %s15, 2
      // Predicated region
      $region37: #{fpn_forward.1} parent=5 // pred_check
        %p279 = pneg %p278
      $region38: #{fpn_forward.1} parent=5 // pred_check_branch
        %281 = sbr.rel (%p279) target = $region40
      $region39: #{fpn_forward.1} parent=5 // pred_region
        // Predicated region
        $region41: #{fpn_forward.1} parent=39 // pred_check
          %p282 = pneg %p35
        $region42: #{fpn_forward.1} parent=39 // pred_check_branch
          %284 = sbr.rel (%p282) target = $region44
        $region43: #{fpn_forward.1} parent=39 // pred_region
          %s285 = smul.u32 4, %s15
          %s286 = ssub.s32 7, %s285
          %p287 = scmp.lt.s32.totalorder %s286, 4
          %s288 = scalar_select %p287, %s286, 4
          %s289 = smul.u32 64, %s288
          %s290 = smul.u32 %s289, 2
          %p291 = scmp.lt.s32.totalorder %s285, 6
          %s292 = scalar_select %p291, %s285, 6
          %s293 = smul.addr %s292, 2
          %s294 = smul.addr %s293, 4
          %s295 = scalar_lea.vmem %s0, %s294
          %s296 = smul.u32 4, %s15
          %s297 = ssub.s32 7, %s296
          %p298 = scmp.lt.s32.totalorder %s297, 4
          %s299 = scalar_select %p298, %s297, 4
          %s300 = smul.u32 64, %s299
          %s301 = smul.u32 %s300, 2
        $region44: #{fpn_forward.1} parent=39 // pred_fallthru
          _
        // Predicated region
        $region45: #{fpn_forward.1} parent=39 // pred_check
          %p302 = pneg %p61
        $region46: #{fpn_forward.1} parent=39 // pred_check_branch
          %304 = sbr.rel (%p302) target = $region48
        $region47: #{fpn_forward.1} parent=39 // pred_region
          %s305 = smul.u32 4, %s15
          %s306 = ssub.s32 7, %s305
          %p307 = scmp.lt.s32.totalorder %s306, 4
          %s308 = scalar_select %p307, %s306, 4
          %s309 = smul.u32 64, %s308
          %s310 = smul.u32 %s309, 2
          %p311 = scmp.lt.s32.totalorder %s305, 6
          %s312 = scalar_select %p311, %s305, 6
          %s313 = smul.addr %s312, 2
          %s314 = smul.addr %s313, 4
          %s315 = scalar_lea.vmem %s1, %s314
          %s316 = smul.u32 4, %s15
          %s317 = ssub.s32 7, %s316
          %p318 = scmp.lt.s32.totalorder %s317, 4
          %s319 = scalar_select %p318, %s317, 4
          %s320 = smul.u32 64, %s319
          %s321 = smul.u32 %s320, 2
        $region48: #{fpn_forward.1} parent=39 // pred_fallthru
          _
        // Predicated region
        $region49: #{fpn_forward.1} parent=39 // pred_check
          %p322 = pneg %p87
        $region50: #{fpn_forward.1} parent=39 // pred_check_branch
          %324 = sbr.rel (%p322) target = $region52
        $region51: #{fpn_forward.1} parent=39 // pred_region
          %s325 = smul.u32 4, %s15
          %s326 = ssub.s32 7, %s325
          %p327 = scmp.lt.s32.totalorder %s326, 4
          %s328 = scalar_select %p327, %s326, 4
          %s329 = smul.u32 64, %s328
          %p330 = scmp.lt.s32.totalorder %s325, 6
          %s331 = scalar_select %p330, %s325, 6
          %s332 = smul.addr %s331, 4
          %s333 = scalar_lea.vmem %s2, %s332
          %s334 = smul.u32 4, %s15
          %s335 = ssub.s32 7, %s334
          %p336 = scmp.lt.s32.totalorder %s335, 4
          %s337 = scalar_select %p336, %s335, 4
          %s338 = smul.u32 64, %s337
        $region52: #{fpn_forward.1} parent=39 // pred_fallthru
          _
      $region40: #{fpn_forward.1} parent=5 // pred_fallthru
        _
      %p339 = scmp.le.s32.totalorder 1, %s15
      %p340 = scmp.lt.s32.totalorder %s15, 3
      %p341 = pnand %p339, %p340
      %p342 = pneg %p341
      // Predicated region
      $region53: #{fpn_forward.1} parent=5 // pred_check
        _
      $region54: #{fpn_forward.1} parent=5 // pred_check_branch
        %344 = sbr.rel (%p341) target = $region56
      $region55: #{fpn_forward.1} parent=5 // pred_region
        %s345 = ssub.s32 %s15, 1
        %s346 = smul.u32 4, %s20
        %s347 = ssub.s32 7, %s346
        %p348 = scmp.lt.s32.totalorder %s347, 4
        %s349 = scalar_select %p348, %s347, 4
        %s350 = smul.u32 64, %s349
        %s351 = smul.u32 %s350, 2
        %p352 = scmp.lt.s32.totalorder %s346, 6
        %s353 = scalar_select %p352, %s346, 6
        %s354 = smul.addr %s353, 2
        %s355 = smul.addr %s354, 4
        %s356 = scalar_lea.vmem %s0, %s355
        %p357 = pneg %p41
        %p358 = pneg %p38
        %s359 = smul.u32 4, %s20
        %s360 = ssub.s32 7, %s359
        %p361 = scmp.lt.s32.totalorder %s360, 4
        %s362 = scalar_select %p361, %s360, 4
        %s363 = smul.u32 64, %s362
        %s364 = smul.u32 %s363, 2
        %p365 = scmp.lt.s32.totalorder %s359, 6
        %s366 = scalar_select %p365, %s359, 6
        %s367 = smul.addr %s366, 2
        %s368 = smul.addr %s367, 4
        %s369 = scalar_lea.vmem %s1, %s368
        %p370 = pneg %p67
        %p371 = pneg %p64
        %s372 = smul.u32 4, %s20
        %s373 = ssub.s32 7, %s372
        %p374 = scmp.lt.s32.totalorder %s373, 4
        %s375 = scalar_select %p374, %s373, 4
        %s376 = smul.u32 64, %s375
        %p377 = scmp.lt.s32.totalorder %s372, 6
        %s378 = scalar_select %p377, %s372, 6
        %s379 = smul.addr %s378, 4
        %s380 = scalar_lea.vmem %s2, %s379
        %p381 = pneg %p93
        %p382 = pneg %p90
        %p383 = pneg %p114
        %p384 = pneg %p111
        %p385 = pneg %p135
        %p386 = pneg %p132
        %p387 = pneg %p156
        %p388 = pneg %p153
        %p389 = pneg %p177
        %p390 = pneg %p174
        %p391 = pneg %p198
        %p392 = pneg %p195
        %p393 = pneg %p219
        %p394 = pneg %p216
        %p395 = pneg %p245
        %p396 = pneg %p242
        %s397 = sand.u32 %s232, 1
        %s398 = sand.u32 %s232, 1
        %s399 = smul.addr %s398, 16
        %s400 = scalar_lea.vmem [#allocation2], %s399
        %s401 = smul.u32 4, %s20
        %s402 = ssub.s32 7, %s401
        %p403 = scmp.lt.s32.totalorder %s402, 4
        %s404 = scalar_select %p403, %s402, 4
        %s405 = smul.u32 64, %s404
        %s406 = smul.u32 %s405, 2
        %p407 = scmp.lt.s32.totalorder %s401, 6
        %s408 = scalar_select %p407, %s401, 6
        %s409 = smul.addr %s408, 2
        %s410 = smul.addr %s409, 4
        %s411 = scalar_lea.vmem %s0, %s410
        %s412 = smul.u32 4, %s20
        %s413 = ssub.s32 7, %s412
        %p414 = scmp.lt.s32.totalorder %s413, 4
        %s415 = scalar_select %p414, %s413, 4
        %s416 = smul.u32 64, %s415
        %s417 = smul.u32 %s416, 2
        %s418 = smul.u32 4, %s20
        %s419 = ssub.s32 7, %s418
        %p420 = scmp.lt.s32.totalorder %s419, 4
        %s421 = scalar_select %p420, %s419, 4
        %s422 = smul.u32 64, %s421
        %s423 = smul.u32 %s422, 2
        %p424 = scmp.lt.s32.totalorder %s418, 6
        %s425 = scalar_select %p424, %s418, 6
        %s426 = smul.addr %s425, 2
        %s427 = smul.addr %s426, 4
        %s428 = scalar_lea.vmem %s1, %s427
        %s429 = smul.u32 4, %s20
        %s430 = ssub.s32 7, %s429
        %p431 = scmp.lt.s32.totalorder %s430, 4
        %s432 = scalar_select %p431, %s430, 4
        %s433 = smul.u32 64, %s432
        %s434 = smul.u32 %s433, 2
        %s435 = smul.u32 4, %s20
        %s436 = ssub.s32 7, %s435
        %p437 = scmp.lt.s32.totalorder %s436, 4
        %s438 = scalar_select %p437, %s436, 4
        %s439 = smul.u32 64, %s438
        %p440 = scmp.lt.s32.totalorder %s435, 6
        %s441 = scalar_select %p440, %s435, 6
        %s442 = smul.addr %s441, 4
        %s443 = scalar_lea.vmem %s2, %s442
        %s444 = smul.u32 4, %s20
        %s445 = ssub.s32 7, %s444
        %p446 = scmp.lt.s32.totalorder %s445, 4
        %s447 = scalar_select %p446, %s445, 4
        %s448 = smul.u32 64, %s447
        %s449 = smul.u32 4, %s20
        %s450 = ssub.s32 7, %s449
        %p451 = scmp.lt.s32.totalorder %s450, 4
        %s452 = scalar_select %p451, %s450, 4
        %s453 = smul.u32 64, %s452
        %v455 = vld [vmem:[%s411] sm:$0xff]
        %v456 = vld [vmem:[%s411 + $0x8] sm:$0xff]
        %v457 = vld [vmem:[%s411 + $0x10] sm:$0xff]
        %v458 = vld [vmem:[%s411 + $0x18] sm:$0xff]
        %v459 = vld [vmem:[%s3] sm:$0xf]
        %v460 = vld [vmem:[%s3 + $0x4] sm:$0xf]
        %v461 = vld [vmem:[%s3 + $0x8] sm:$0xf]
        %v462 = vld [vmem:[%s3 + $0xc] sm:$0xf]
        %v463 = vld [vmem:[%s3 + $0x10] sm:$0xf]
        %v464 = vld [vmem:[%s3 + $0x14] sm:$0xf]
        %v465 = vld [vmem:[%s3 + $0x18] sm:$0xf]
        %v466 = vld [vmem:[%s3 + $0x1c] sm:$0xf]
        %v467 = vld [vmem:[%s3 + $0x20] sm:$0xf]
        %v468 = vld [vmem:[%s3 + $0x24] sm:$0xf]
        %v469 = vld [vmem:[%s3 + $0x28] sm:$0xf]
        %v470 = vld [vmem:[%s3 + $0x2c] sm:$0xf]
        %v471 = vld [vmem:[%s3 + $0x30] sm:$0xf]
        %v472 = vld [vmem:[%s3 + $0x34] sm:$0xf]
        %v473 = vld [vmem:[%s3 + $0x38] sm:$0xf]
        %v474 = vld [vmem:[%s3 + $0x3c] sm:$0xf]
        %v475 = vld [vmem:[%s3 + $0x40] sm:$0xf]
        %v476 = vld [vmem:[%s3 + $0x44] sm:$0xf]
        %v477 = vld [vmem:[%s3 + $0x48] sm:$0xf]
        %v478 = vld [vmem:[%s3 + $0x4c] sm:$0xf]
        %v479 = vld [vmem:[%s3 + $0x50] sm:$0xf]
        %v480 = vld [vmem:[%s3 + $0x54] sm:$0xf]
        %v481 = vld [vmem:[%s3 + $0x58] sm:$0xf]
        %v482 = vld [vmem:[%s3 + $0x5c] sm:$0xf]
        %v483 = vld [vmem:[%s3 + $0x60] sm:$0xf]
        %v484 = vld [vmem:[%s3 + $0x64] sm:$0xf]
        %v485 = vld [vmem:[%s3 + $0x68] sm:$0xf]
        %v486 = vld [vmem:[%s3 + $0x6c] sm:$0xf]
        %v487 = vld [vmem:[%s3 + $0x70] sm:$0xf]
        %v488 = vld [vmem:[%s3 + $0x74] sm:$0xf]
        %v489 = vld [vmem:[%s3 + $0x78] sm:$0xf]
        %v490 = vld [vmem:[%s3 + $0x7c] sm:$0xf]
        %v491 = vld [vmem:[%s428] sm:$0xff]
        %v492 = vld [vmem:[%s428 + $0x8] sm:$0xff]
        %v493 = vld [vmem:[%s428 + $0x10] sm:$0xff]
        %v494 = vld [vmem:[%s428 + $0x18] sm:$0xff]
        %v495 = vld [vmem:[%s4] sm:$0xf]
        %v496 = vld [vmem:[%s4 + $0x4] sm:$0xf]
        %v497 = vld [vmem:[%s4 + $0x8] sm:$0xf]
        %v498 = vld [vmem:[%s4 + $0xc] sm:$0xf]
        %v499 = vld [vmem:[%s4 + $0x10] sm:$0xf]
        %v500 = vld [vmem:[%s4 + $0x14] sm:$0xf]
        %v501 = vld [vmem:[%s4 + $0x18] sm:$0xf]
        %v502 = vld [vmem:[%s4 + $0x1c] sm:$0xf]
        %v503 = vld [vmem:[%s4 + $0x20] sm:$0xf]
        %v504 = vld [vmem:[%s4 + $0x24] sm:$0xf]
        %v505 = vld [vmem:[%s4 + $0x28] sm:$0xf]
        %v506 = vld [vmem:[%s4 + $0x2c] sm:$0xf]
        %v507 = vld [vmem:[%s4 + $0x30] sm:$0xf]
        %v508 = vld [vmem:[%s4 + $0x34] sm:$0xf]
        %v509 = vld [vmem:[%s4 + $0x38] sm:$0xf]
        %v510 = vld [vmem:[%s4 + $0x3c] sm:$0xf]
        %v511 = vld [vmem:[%s4 + $0x40] sm:$0xf]
        %v512 = vld [vmem:[%s4 + $0x44] sm:$0xf]
        %v513 = vld [vmem:[%s4 + $0x48] sm:$0xf]
        %v514 = vld [vmem:[%s4 + $0x4c] sm:$0xf]
        %v515 = vld [vmem:[%s4 + $0x50] sm:$0xf]
        %v516 = vld [vmem:[%s4 + $0x54] sm:$0xf]
        %v517 = vld [vmem:[%s4 + $0x58] sm:$0xf]
        %v518 = vld [vmem:[%s4 + $0x5c] sm:$0xf]
        %v519 = vld [vmem:[%s4 + $0x60] sm:$0xf]
        %v520 = vld [vmem:[%s4 + $0x64] sm:$0xf]
        %v521 = vld [vmem:[%s4 + $0x68] sm:$0xf]
        %v522 = vld [vmem:[%s4 + $0x6c] sm:$0xf]
        %v523 = vld [vmem:[%s4 + $0x70] sm:$0xf]
        %v524 = vld [vmem:[%s4 + $0x74] sm:$0xf]
        %v525 = vld [vmem:[%s4 + $0x78] sm:$0xf]
        %v526 = vld [vmem:[%s4 + $0x7c] sm:$0xf]
        %v531 = vunpack.c.l.b16 %v491
        %v532 = vunpack.c.h.b16 %v491
        %v533 = vunpack.c.l.b16 %v492
        %v534 = vunpack.c.h.b16 %v492
        %v535 = vunpack.c.l.b16 %v493
        %v536 = vunpack.c.h.b16 %v493
        %v537 = vunpack.c.l.b16 %v494
        %v538 = vunpack.c.h.b16 %v494
        %v539 = vpack.c.b16 %v533, %v531
        %v540 = vpack.c.b16 %v534, %v532
        %v541 = vpack.c.b16 %v537, %v535
        %v542 = vpack.c.b16 %v538, %v536
        %v579 = vunpack.c.l.b16 %v495
        %v580 = vunpack.c.l.b16 %v496
        %v581 = vunpack.c.l.b16 %v497
        %v582 = vunpack.c.l.b16 %v498
        %v583 = vunpack.c.l.b16 %v499
        %v584 = vunpack.c.l.b16 %v500
        %v585 = vunpack.c.l.b16 %v501
        %v586 = vunpack.c.l.b16 %v502
        %v587 = vunpack.c.l.b16 %v503
        %v588 = vunpack.c.l.b16 %v504
        %v589 = vunpack.c.l.b16 %v505
        %v590 = vunpack.c.l.b16 %v506
        %v591 = vunpack.c.l.b16 %v507
        %v592 = vunpack.c.l.b16 %v508
        %v593 = vunpack.c.l.b16 %v509
        %v594 = vunpack.c.l.b16 %v510
        %v595 = vunpack.c.l.b16 %v511
        %v596 = vunpack.c.l.b16 %v512
        %v597 = vunpack.c.l.b16 %v513
        %v598 = vunpack.c.l.b16 %v514
        %v599 = vunpack.c.l.b16 %v515
        %v600 = vunpack.c.l.b16 %v516
        %v601 = vunpack.c.l.b16 %v517
        %v602 = vunpack.c.l.b16 %v518
        %v603 = vunpack.c.l.b16 %v519
        %v604 = vunpack.c.l.b16 %v520
        %v605 = vunpack.c.l.b16 %v521
        %v606 = vunpack.c.l.b16 %v522
        %v607 = vunpack.c.l.b16 %v523
        %v608 = vunpack.c.l.b16 %v524
        %v609 = vunpack.c.l.b16 %v525
        %v610 = vunpack.c.l.b16 %v526
        %v611 = vpack.c.b16 %v580, %v579
        %v612 = vpack.c.b16 %v582, %v581
        %v613 = vpack.c.b16 %v584, %v583
        %v614 = vpack.c.b16 %v586, %v585
        %v615 = vpack.c.b16 %v588, %v587
        %v616 = vpack.c.b16 %v590, %v589
        %v617 = vpack.c.b16 %v592, %v591
        %v618 = vpack.c.b16 %v594, %v593
        %v619 = vpack.c.b16 %v596, %v595
        %v620 = vpack.c.b16 %v598, %v597
        %v621 = vpack.c.b16 %v600, %v599
        %v622 = vpack.c.b16 %v602, %v601
        %v623 = vpack.c.b16 %v604, %v603
        %v624 = vpack.c.b16 %v606, %v605
        %v625 = vpack.c.b16 %v608, %v607
        %v626 = vpack.c.b16 %v610, %v609
        %643 = vmatprep.subr.bf16.mxu0 0
        %644 = vmatpush1.bf16.msra.mxu0 %v618
        %645 = vmatprep.subr.bf16.mxu0 0
        %646 = vmatpush1.bf16.msra.mxu0 %v617
        %647 = vmatprep.subr.bf16.mxu0 0
        %648 = vmatpush1.bf16.msra.mxu0 %v616
        %649 = vmatprep.subr.bf16.mxu0 0
        %650 = vmatpush1.bf16.msra.mxu0 %v615
        %651 = vmatprep.subr.bf16.mxu0 0
        %652 = vmatpush1.bf16.msra.mxu0 %v614
        %653 = vmatprep.subr.bf16.mxu0 0
        %654 = vmatpush1.bf16.msra.mxu0 %v613
        %655 = vmatprep.subr.bf16.mxu0 0
        %656 = vmatpush1.bf16.msra.mxu0 %v612
        %657 = vmatprep.subr.bf16.mxu0 0
        %658 = vmatpush1.bf16.msra.mxu0 %v611
        %659 = vmatprep.subr.bf16.mxu0 0
        %660 = vmatpush2.bf16.msra.mxu0 %v626
        %661 = vmatprep.subr.bf16.mxu0 0
        %662 = vmatpush2.bf16.msra.mxu0 %v625
        %663 = vmatprep.subr.bf16.mxu0 0
        %664 = vmatpush2.bf16.msra.mxu0 %v624
        %665 = vmatprep.subr.bf16.mxu0 0
        %666 = vmatpush2.bf16.msra.mxu0 %v623
        %667 = vmatprep.subr.bf16.mxu0 0
        %668 = vmatpush2.bf16.msra.mxu0 %v622
        %669 = vmatprep.subr.bf16.mxu0 0
        %670 = vmatpush2.bf16.msra.mxu0 %v621
        %671 = vmatprep.subr.bf16.mxu0 0
        %672 = vmatpush2.bf16.msra.mxu0 %v620
        %673 = vmatprep.subr.bf16.mxu0 0
        %674 = vmatpush2.bf16.msra.mxu0 %v619
        %675 = vmatprep.mubr.bf16.mxu0 %v540
        %676 = vmatmul.mubr.bf16.gmra.mxu0 %v539
        %v677 = vpop.f32.mrf.mxu0
        %v678 = vadd.f32 0.0, %v677
        %v679 = vpop.f32.mrf.mxu0
        %v680 = vpop.f32.mrf.mxu0
        %v681 = vadd.f32 0.0, %v680
        %v682 = vpop.f32.mrf.mxu0
        %683 = vmatprep.mubr.bf16.mxu0 %v542
        %684 = vmatmul.mubr.bf16.gmra.mxu0 %v541
        %v685 = vpop.f32.mrf.mxu0
        %v686 = vadd.f32 0.0, %v685
        %v687 = vpop.f32.mrf.mxu0
        %v688 = vpop.f32.mrf.mxu0
        %v689 = vadd.f32 0.0, %v688
        %v690 = vpop.f32.mrf.mxu0
        %691 = vdwg.mxu0
        %v696 = vunpack.c.l.b16 %v455
        %v697 = vunpack.c.h.b16 %v455
        %v698 = vunpack.c.l.b16 %v456
        %v699 = vunpack.c.h.b16 %v456
        %v700 = vunpack.c.l.b16 %v457
        %v701 = vunpack.c.h.b16 %v457
        %v702 = vunpack.c.l.b16 %v458
        %v703 = vunpack.c.h.b16 %v458
        %v704 = vpack.c.b16 %v698, %v696
        %v705 = vpack.c.b16 %v699, %v697
        %v706 = vpack.c.b16 %v702, %v700
        %v707 = vpack.c.b16 %v703, %v701
        %v744 = vunpack.c.l.b16 %v459
        %v745 = vunpack.c.l.b16 %v460
        %v746 = vunpack.c.l.b16 %v461
        %v747 = vunpack.c.l.b16 %v462
        %v748 = vunpack.c.l.b16 %v463
        %v749 = vunpack.c.l.b16 %v464
        %v750 = vunpack.c.l.b16 %v465
        %v751 = vunpack.c.l.b16 %v466
        %v752 = vunpack.c.l.b16 %v467
        %v753 = vunpack.c.l.b16 %v468
        %v754 = vunpack.c.l.b16 %v469
        %v755 = vunpack.c.l.b16 %v470
        %v756 = vunpack.c.l.b16 %v471
        %v757 = vunpack.c.l.b16 %v472
        %v758 = vunpack.c.l.b16 %v473
        %v759 = vunpack.c.l.b16 %v474
        %v760 = vunpack.c.l.b16 %v475
        %v761 = vunpack.c.l.b16 %v476
        %v762 = vunpack.c.l.b16 %v477
        %v763 = vunpack.c.l.b16 %v478
        %v764 = vunpack.c.l.b16 %v479
        %v765 = vunpack.c.l.b16 %v480
        %v766 = vunpack.c.l.b16 %v481
        %v767 = vunpack.c.l.b16 %v482
        %v768 = vunpack.c.l.b16 %v483
        %v769 = vunpack.c.l.b16 %v484
        %v770 = vunpack.c.l.b16 %v485
        %v771 = vunpack.c.l.b16 %v486
        %v772 = vunpack.c.l.b16 %v487
        %v773 = vunpack.c.l.b16 %v488
        %v774 = vunpack.c.l.b16 %v489
        %v775 = vunpack.c.l.b16 %v490
        %v776 = vpack.c.b16 %v745, %v744
        %v777 = vpack.c.b16 %v747, %v746
        %v778 = vpack.c.b16 %v749, %v748
        %v779 = vpack.c.b16 %v751, %v750
        %v780 = vpack.c.b16 %v753, %v752
        %v781 = vpack.c.b16 %v755, %v754
        %v782 = vpack.c.b16 %v757, %v756
        %v783 = vpack.c.b16 %v759, %v758
        %v784 = vpack.c.b16 %v761, %v760
        %v785 = vpack.c.b16 %v763, %v762
        %v786 = vpack.c.b16 %v765, %v764
        %v787 = vpack.c.b16 %v767, %v766
        %v788 = vpack.c.b16 %v769, %v768
        %v789 = vpack.c.b16 %v771, %v770
        %v790 = vpack.c.b16 %v773, %v772
        %v791 = vpack.c.b16 %v775, %v774
        %808 = vmatprep.subr.bf16.mxu0 0
        %809 = vmatpush1.bf16.msra.mxu0 %v783
        %810 = vmatprep.subr.bf16.mxu0 0
        %811 = vmatpush1.bf16.msra.mxu0 %v782
        %812 = vmatprep.subr.bf16.mxu0 0
        %813 = vmatpush1.bf16.msra.mxu0 %v781
        %814 = vmatprep.subr.bf16.mxu0 0
        %815 = vmatpush1.bf16.msra.mxu0 %v780
        %816 = vmatprep.subr.bf16.mxu0 0
        %817 = vmatpush1.bf16.msra.mxu0 %v779
        %818 = vmatprep.subr.bf16.mxu0 0
        %819 = vmatpush1.bf16.msra.mxu0 %v778
        %820 = vmatprep.subr.bf16.mxu0 0
        %821 = vmatpush1.bf16.msra.mxu0 %v777
        %822 = vmatprep.subr.bf16.mxu0 0
        %823 = vmatpush1.bf16.msra.mxu0 %v776
        %824 = vmatprep.subr.bf16.mxu0 0
        %825 = vmatpush2.bf16.msra.mxu0 %v791
        %826 = vmatprep.subr.bf16.mxu0 0
        %827 = vmatpush2.bf16.msra.mxu0 %v790
        %828 = vmatprep.subr.bf16.mxu0 0
        %829 = vmatpush2.bf16.msra.mxu0 %v789
        %830 = vmatprep.subr.bf16.mxu0 0
        %831 = vmatpush2.bf16.msra.mxu0 %v788
        %832 = vmatprep.subr.bf16.mxu0 0
        %833 = vmatpush2.bf16.msra.mxu0 %v787
        %834 = vmatprep.subr.bf16.mxu0 0
        %835 = vmatpush2.bf16.msra.mxu0 %v786
        %836 = vmatprep.subr.bf16.mxu0 0
        %837 = vmatpush2.bf16.msra.mxu0 %v785
        %838 = vmatprep.subr.bf16.mxu0 0
        %839 = vmatpush2.bf16.msra.mxu0 %v784
        %840 = vmatprep.mubr.bf16.mxu0 %v705
        %841 = vmatmul.mubr.bf16.gmra.mxu0 %v704
        %v842 = vpop.f32.mrf.mxu0
        %v843 = vadd.f32 %v678, %v842
        %v844 = vpop.f32.mrf.mxu0
        %v845 = vpop.f32.mrf.mxu0
        %v846 = vadd.f32 %v681, %v845
        %v847 = vpop.f32.mrf.mxu0
        %848 = vmatprep.mubr.bf16.mxu0 %v707
        %849 = vmatmul.mubr.bf16.gmra.mxu0 %v706
        %v850 = vpop.f32.mrf.mxu0
        %v851 = vadd.f32 %v686, %v850
        %v852 = vpop.f32.mrf.mxu0
        %v853 = vpop.f32.mrf.mxu0
        %v854 = vadd.f32 %v689, %v853
        %v855 = vpop.f32.mrf.mxu0
        %856 = vdwg.mxu0
        %v857 = vld [vmem:[%s443] sm:$0xf]
        %v858 = vld [vmem:[%s443 + $0x4] sm:$0xf]
        %v859 = vld [vmem:[%s443 + $0x8] sm:$0xf]
        %v860 = vld [vmem:[%s443 + $0xc] sm:$0xf]
        %v861 = vld [vmem:[%s5] sm:$0xf]
        %v862 = vld [vmem:[%s5 + $0x4] sm:$0xf]
        %v863 = vld [vmem:[%s5 + $0x8] sm:$0xf]
        %v864 = vld [vmem:[%s5 + $0xc] sm:$0xf]
        %v865 = vld [vmem:[%s5 + $0x10] sm:$0xf]
        %v866 = vld [vmem:[%s5 + $0x14] sm:$0xf]
        %v867 = vld [vmem:[%s5 + $0x18] sm:$0xf]
        %v868 = vld [vmem:[%s5 + $0x1c] sm:$0xf]
        %v869 = vld [vmem:[%s5 + $0x20] sm:$0xf]
        %v870 = vld [vmem:[%s5 + $0x24] sm:$0xf]
        %v871 = vld [vmem:[%s5 + $0x28] sm:$0xf]
        %v872 = vld [vmem:[%s5 + $0x2c] sm:$0xf]
        %v873 = vld [vmem:[%s5 + $0x30] sm:$0xf]
        %v874 = vld [vmem:[%s5 + $0x34] sm:$0xf]
        %v875 = vld [vmem:[%s5 + $0x38] sm:$0xf]
        %v876 = vld [vmem:[%s5 + $0x3c] sm:$0xf]
        %v881 = vunpack.c.l.b16 %v857
        %v882 = vunpack.c.l.b16 %v858
        %v883 = vunpack.c.l.b16 %v859
        %v884 = vunpack.c.l.b16 %v860
        %v885 = vpack.c.b16 %v882, %v881
        %v886 = vpack.c.b16 %v884, %v883
        %v905 = vunpack.c.l.b16 %v861
        %v906 = vunpack.c.l.b16 %v862
        %v907 = vunpack.c.l.b16 %v863
        %v908 = vunpack.c.l.b16 %v864
        %v909 = vunpack.c.l.b16 %v865
        %v910 = vunpack.c.l.b16 %v866
        %v911 = vunpack.c.l.b16 %v867
        %v912 = vunpack.c.l.b16 %v868
        %v913 = vunpack.c.l.b16 %v869
        %v914 = vunpack.c.l.b16 %v870
        %v915 = vunpack.c.l.b16 %v871
        %v916 = vunpack.c.l.b16 %v872
        %v917 = vunpack.c.l.b16 %v873
        %v918 = vunpack.c.l.b16 %v874
        %v919 = vunpack.c.l.b16 %v875
        %v920 = vunpack.c.l.b16 %v876
        %v921 = vpack.c.b16 %v906, %v905
        %v922 = vpack.c.b16 %v908, %v907
        %v923 = vpack.c.b16 %v910, %v909
        %v924 = vpack.c.b16 %v912, %v911
        %v925 = vpack.c.b16 %v914, %v913
        %v926 = vpack.c.b16 %v916, %v915
        %v927 = vpack.c.b16 %v918, %v917
        %v928 = vpack.c.b16 %v920, %v919
        %937 = vmatprep.subr.bf16.mxu0 0
        %938 = vmatpush1.bf16.msra.mxu0 %v928
        %939 = vmatprep.subr.bf16.mxu0 0
        %940 = vmatpush1.bf16.msra.mxu0 %v927
        %941 = vmatprep.subr.bf16.mxu0 0
        %942 = vmatpush1.bf16.msra.mxu0 %v926
        %943 = vmatprep.subr.bf16.mxu0 0
        %944 = vmatpush1.bf16.msra.mxu0 %v925
        %945 = vmatprep.subr.bf16.mxu0 0
        %946 = vmatpush1.bf16.msra.mxu0 %v924
        %947 = vmatprep.subr.bf16.mxu0 0
        %948 = vmatpush1.bf16.msra.mxu0 %v923
        %949 = vmatprep.subr.bf16.mxu0 0
        %950 = vmatpush1.bf16.msra.mxu0 %v922
        %951 = vmatprep.subr.bf16.mxu0 0
        %952 = vmatpush1.bf16.msra.mxu0 %v921
        %953 = vmatprep.subr.bf16.mxu0 0
        %954 = vmatpush2.bf16.msra.mxu0 0
        %955 = vmatprep.subr.bf16.mxu0 0
        %956 = vmatpush2.bf16.msra.mxu0 0
        %957 = vmatprep.subr.bf16.mxu0 0
        %958 = vmatpush2.bf16.msra.mxu0 0
        %959 = vmatprep.subr.bf16.mxu0 0
        %960 = vmatpush2.bf16.msra.mxu0 0
        %961 = vmatprep.subr.bf16.mxu0 0
        %962 = vmatpush2.bf16.msra.mxu0 0
        %963 = vmatprep.subr.bf16.mxu0 0
        %964 = vmatpush2.bf16.msra.mxu0 0
        %965 = vmatprep.subr.bf16.mxu0 0
        %966 = vmatpush2.bf16.msra.mxu0 0
        %967 = vmatprep.subr.bf16.mxu0 0
        %968 = vmatpush2.bf16.msra.mxu0 0
        %969 = vmatprep.mubr.bf16.mxu0 0
        %970 = vmatmul.mubr.bf16.gmra.mxu0 %v885
        %v971 = vpop.f32.mrf.mxu0
        %v972 = vadd.f32 0.0, %v971
        %v973 = vpop.f32.mrf.mxu0
        %v974 = vpop.f32.mrf.mxu0
        %v975 = vadd.f32 0.0, %v974
        %v976 = vpop.f32.mrf.mxu0
        %977 = vmatprep.mubr.bf16.mxu0 0
        %978 = vmatmul.mubr.bf16.gmra.mxu0 %v886
        %v979 = vpop.f32.mrf.mxu0
        %v980 = vadd.f32 0.0, %v979
        %v981 = vpop.f32.mrf.mxu0
        %v982 = vpop.f32.mrf.mxu0
        %v983 = vadd.f32 0.0, %v982
        %v984 = vpop.f32.mrf.mxu0
        %985 = vdwg.mxu0
        %v986 = vadd.f32 %v843, %v972
        %v987 = vadd.f32 %v846, %v975
        %v988 = vadd.f32 %v851, %v980
        %v989 = vadd.f32 %v854, %v983
        %v990 = vld [vmem:[%s6] sm:$0x1]
        %v992 = vlaneseq
        %v993 = vshrl.u32 %v992, 7
        %v994 = vsub.s32 0, %v993
        %v995 = vrot.slane %v990, %v994
        %v997 = vadd.f32 %v986, %v995
        %v998 = vadd.f32 %v987, %v995
        %v999 = vadd.f32 %v988, %v995
        %v1000 = vadd.f32 %v989, %v995
        %v1001 = vtanh.pop %v997
        %v1002 = vtanh.pop %v998
        %v1003 = vtanh.pop %v999
        %v1004 = vtanh.pop %v1000
        %v1005 = vpack.c.bf16 %v1002, %v1001
        %v1006 = vpack.c.bf16 %v1004, %v1003
        %v1007 = vld [vmem:[%s7] sm:$0xf]
        %v1008 = vld [vmem:[%s7 + $0x4] sm:$0xf]
        %v1009 = vld [vmem:[%s7 + $0x8] sm:$0xf]
        %v1010 = vld [vmem:[%s7 + $0xc] sm:$0xf]
        %v1011 = vld [vmem:[%s7 + $0x10] sm:$0xf]
        %v1012 = vld [vmem:[%s7 + $0x14] sm:$0xf]
        %v1013 = vld [vmem:[%s7 + $0x18] sm:$0xf]
        %v1014 = vld [vmem:[%s7 + $0x1c] sm:$0xf]
        %v1015 = vld [vmem:[%s7 + $0x20] sm:$0xf]
        %v1016 = vld [vmem:[%s7 + $0x24] sm:$0xf]
        %v1017 = vld [vmem:[%s7 + $0x28] sm:$0xf]
        %v1018 = vld [vmem:[%s7 + $0x2c] sm:$0xf]
        %v1019 = vld [vmem:[%s7 + $0x30] sm:$0xf]
        %v1020 = vld [vmem:[%s7 + $0x34] sm:$0xf]
        %v1021 = vld [vmem:[%s7 + $0x38] sm:$0xf]
        %v1022 = vld [vmem:[%s7 + $0x3c] sm:$0xf]
        %v1023 = vld [vmem:[%s8] sm:$0x1]
        %v1025 = vlaneseq
        %v1026 = vshrl.u32 %v1025, 7
        %v1027 = vsub.s32 0, %v1026
        %v1028 = vrot.slane %v1023, %v1027
        %v1046 = vunpack.c.l.b16 %v1007
        %v1047 = vunpack.c.l.b16 %v1008
        %v1048 = vunpack.c.l.b16 %v1009
        %v1049 = vunpack.c.l.b16 %v1010
        %v1050 = vunpack.c.l.b16 %v1011
        %v1051 = vunpack.c.l.b16 %v1012
        %v1052 = vunpack.c.l.b16 %v1013
        %v1053 = vunpack.c.l.b16 %v1014
        %v1054 = vunpack.c.l.b16 %v1015
        %v1055 = vunpack.c.l.b16 %v1016
        %v1056 = vunpack.c.l.b16 %v1017
        %v1057 = vunpack.c.l.b16 %v1018
        %v1058 = vunpack.c.l.b16 %v1019
        %v1059 = vunpack.c.l.b16 %v1020
        %v1060 = vunpack.c.l.b16 %v1021
        %v1061 = vunpack.c.l.b16 %v1022
        %v1062 = vpack.c.b16 %v1047, %v1046
        %v1063 = vpack.c.b16 %v1049, %v1048
        %v1064 = vpack.c.b16 %v1051, %v1050
        %v1065 = vpack.c.b16 %v1053, %v1052
        %v1066 = vpack.c.b16 %v1055, %v1054
        %v1067 = vpack.c.b16 %v1057, %v1056
        %v1068 = vpack.c.b16 %v1059, %v1058
        %v1069 = vpack.c.b16 %v1061, %v1060
        %1078 = vmatprep.subr.bf16.mxu0 0
        %1079 = vmatpush1.bf16.msra.mxu0 %v1069
        %1080 = vmatprep.subr.bf16.mxu0 0
        %1081 = vmatpush1.bf16.msra.mxu0 %v1068
        %1082 = vmatprep.subr.bf16.mxu0 0
        %1083 = vmatpush1.bf16.msra.mxu0 %v1067
        %1084 = vmatprep.subr.bf16.mxu0 0
        %1085 = vmatpush1.bf16.msra.mxu0 %v1066
        %1086 = vmatprep.subr.bf16.mxu0 0
        %1087 = vmatpush1.bf16.msra.mxu0 %v1065
        %1088 = vmatprep.subr.bf16.mxu0 0
        %1089 = vmatpush1.bf16.msra.mxu0 %v1064
        %1090 = vmatprep.subr.bf16.mxu0 0
        %1091 = vmatpush1.bf16.msra.mxu0 %v1063
        %1092 = vmatprep.subr.bf16.mxu0 0
        %1093 = vmatpush1.bf16.msra.mxu0 %v1062
        %1094 = vmatprep.subr.bf16.mxu0 0
        %1095 = vmatpush2.bf16.msra.mxu0 0
        %1096 = vmatprep.subr.bf16.mxu0 0
        %1097 = vmatpush2.bf16.msra.mxu0 0
        %1098 = vmatprep.subr.bf16.mxu0 0
        %1099 = vmatpush2.bf16.msra.mxu0 0
        %1100 = vmatprep.subr.bf16.mxu0 0
        %1101 = vmatpush2.bf16.msra.mxu0 0
        %1102 = vmatprep.subr.bf16.mxu0 0
        %1103 = vmatpush2.bf16.msra.mxu0 0
        %1104 = vmatprep.subr.bf16.mxu0 0
        %1105 = vmatpush2.bf16.msra.mxu0 0
        %1106 = vmatprep.subr.bf16.mxu0 0
        %1107 = vmatpush2.bf16.msra.mxu0 0
        %1108 = vmatprep.subr.bf16.mxu0 0
        %1109 = vmatpush2.bf16.msra.mxu0 0
        %1110 = vmatprep.mubr.bf16.mxu0 0
        %1111 = vmatmul.mubr.bf16.gmra.mxu0 %v1005
        %v1112 = vpop.f32.mrf.mxu0
        %v1113 = vadd.f32 %v1028, %v1112
        %v1114 = vpop.f32.mrf.mxu0
        %v1115 = vpop.f32.mrf.mxu0
        %v1116 = vadd.f32 %v1028, %v1115
        %v1117 = vpop.f32.mrf.mxu0
        %1118 = vmatprep.mubr.bf16.mxu0 0
        %1119 = vmatmul.mubr.bf16.gmra.mxu0 %v1006
        %v1120 = vpop.f32.mrf.mxu0
        %v1121 = vadd.f32 %v1028, %v1120
        %v1122 = vpop.f32.mrf.mxu0
        %v1123 = vpop.f32.mrf.mxu0
        %v1124 = vadd.f32 %v1028, %v1123
        %v1125 = vpop.f32.mrf.mxu0
        %1126 = vdwg.mxu0
        %v1127 = vpack.c.bf16 %v1116, %v1113
        %v1128 = vpack.c.bf16 %v1124, %v1121
        %v1131 = vunpack.c.l.b16 %v1127
        %v1132 = vunpack.c.h.b16 %v1127
        %v1133 = vunpack.c.l.b16 %v1128
        %v1134 = vunpack.c.h.b16 %v1128
        %v1135 = vpack.c.b16 %v1131, %v1131
        %v1136 = vpack.c.b16 %v1132, %v1132
        %v1137 = vpack.c.b16 %v1133, %v1133
        %v1138 = vpack.c.b16 %v1134, %v1134
        %1143 = vst [vmem:[%s400] sm:$0xf] %v1135
        %1144 = vst [vmem:[%s400 + $0x4] sm:$0xf] %v1136
        %1145 = vst [vmem:[%s400 + $0x8] sm:$0xf] %v1137
        %1146 = vst [vmem:[%s400 + $0xc] sm:$0xf] %v1138
        %s1147 = sand.u32 %s232, 1
        %s1148 = sand.u32 %s232, 1
        %s1149 = smul.addr %s1148, 16
        %s1150 = scalar_lea.vmem [#allocation2], %s1149
        // Predicated region
        $region57: #{fpn_forward.1} parent=55 // pred_check
          %p1151 = pneg %p242
        $region58: #{fpn_forward.1} parent=55 // pred_check_branch
          %1153 = sbr.rel (%p1151) target = $region60
        $region59: #{fpn_forward.1} parent=55 // pred_region
          %s1154 = smul.u32 4, %s20
          %s1155 = ssub.s32 7, %s1154
          %p1156 = scmp.lt.s32.totalorder %s1155, 4
          %s1157 = scalar_select %p1156, %s1155, 4
          %s1158 = smul.u32 64, %s1157
          %p1159 = scmp.ne.s32.totalorder 0, %s1158
          %s1160 = smul.addr %s1154, 4
          %s1161 = scalar_lea.vmem %s9, %s1160
          // Predicated region
          $region61: #{fpn_forward.1} parent=59 // pred_check
            %p1162 = pneg %p1159
          $region62: #{fpn_forward.1} parent=59 // pred_check_branch
            %1164 = sbr.rel (%p1162) target = $region64
          $region63: #{fpn_forward.1} parent=59 // pred_region
            // Predicated region
            $region65: #{fpn_forward.1} parent=63 // pred_check
              _
            $region66: #{fpn_forward.1} parent=63 // pred_check_branch
              %1166 = sbr.rel target = $region68
            $region67: #{fpn_forward.1} parent=63 // pred_region
              // Predicated region
              $region87: #{fpn_forward.1} parent=67 // pred_check
                _
              $region88: #{fpn_forward.1} parent=67 // pred_check_branch
                %1222 = sbr.rel (0) target = $region90
              $region89: #{fpn_forward.1} parent=67 // pred_region
                %s1224 = ssub.s32 16, 1
                %s1225 = sshrl.u32 %s1157, 2
                // While loop
                $region91: #{fpn_forward.1} parent=89 // loop_pre_header
                  _
                $region92: #{fpn_forward.1} parent=89 // loop_header
                  %s1227 = sphi 0, %s1229
                  %p1228 = scmp.ge.s32.totalorder %s1227, %s1225
                  %s1232 = sphi 0, %s1245
                  %s1233 = sphi %s1150, %s1248
                  %s1234 = sphi %s1161, %s1249
                $region93: #{fpn_forward.1} parent=89 // loop_header_branch
                  %1231 = sbr.rel (%p1228) target = $region97
                $region94: #{fpn_forward.1} parent=89 // loop_body
                  %v1235 = vld [vmem:[%s1233] sm:%s1224]
                  %1236 = vst [vmem:[%s1234] sm:%s1224] %v1235
                  %v1237 = vld [vmem:[%s1233 + $0x4] sm:%s1224]
                  %1238 = vst [vmem:[%s1234 + $0x4] sm:%s1224] %v1237
                  %v1239 = vld [vmem:[%s1233 + $0x8] sm:%s1224]
                  %1240 = vst [vmem:[%s1234 + $0x8] sm:%s1224] %v1239
                  %v1241 = vld [vmem:[%s1233 + $0xc] sm:%s1224]
                  %1242 = vst [vmem:[%s1234 + $0xc] sm:%s1224] %v1241
                  %s1243 = sadd.s32 1, %s1232
                  %p1244 = scmp.ge.s32.totalorder %s1243, %s1225
                  %s1245 = scalar_select %p1244, 0, %s1243
                  %s1246 = smul.u32 %s1245, 16
                  %s1247 = smul.u32 %s1245, 16
                  %s1248 = scalar_lea.vmem %s1150, %s1246 [#allocation2]
                  %s1249 = scalar_lea.vmem %s1161, %s1247
                $region95: #{fpn_forward.1} parent=89 // loop_footer
                  %s1229 = sadd.s32 %s1227, 1
                $region96: #{fpn_forward.1} parent=89 // loop_footer_branch
                  %1226 = sbr.rel target = $region92
                $region97: #{fpn_forward.1} parent=89 // loop_exit
                  _
                %s1250 = sshrl.u32 %s1157, 2
                %s1251 = sand.u32 %s1157, 3
                %s1252 = smul.u32 %s1250, 4
                %s1253 = smul.u32 4, %s1252
                %s1254 = scalar_lea.vmem %s1150, %s1253 [#allocation2]
                %s1255 = smul.u32 4, %s1252
                %s1256 = scalar_lea.vmem %s1161, %s1255
                // While loop
                $region98: #{fpn_forward.1} parent=89 // loop_pre_header
                  _
                $region99: #{fpn_forward.1} parent=89 // loop_header
                  %s1258 = sphi 0, %s1260
                  %p1259 = scmp.ge.s32.totalorder %s1258, %s1251
                  %s1263 = sphi 0, %s1270
                  %s1264 = sphi %s1254, %s1273
                  %s1265 = sphi %s1256, %s1274
                $region100: #{fpn_forward.1} parent=89 // loop_header_branch
                  %1262 = sbr.rel (%p1259) target = $region104
                $region101: #{fpn_forward.1} parent=89 // loop_body
                  %v1266 = vld [vmem:[%s1264] sm:%s1224]
                  %1267 = vst [vmem:[%s1265] sm:%s1224] %v1266
                  %s1268 = sadd.s32 1, %s1263
                  %p1269 = scmp.ge.s32.totalorder %s1268, %s1251
                  %s1270 = scalar_select %p1269, 0, %s1268
                  %s1271 = smul.u32 %s1270, 4
                  %s1272 = smul.u32 %s1270, 4
                  %s1273 = scalar_lea.vmem %s1254, %s1271 [#allocation2]
                  %s1274 = scalar_lea.vmem %s1256, %s1272
                $region102: #{fpn_forward.1} parent=89 // loop_footer
                  %s1260 = sadd.s32 %s1258, 1
                $region103: #{fpn_forward.1} parent=89 // loop_footer_branch
                  %1257 = sbr.rel target = $region99
                $region104: #{fpn_forward.1} parent=89 // loop_exit
                  _
              $region90: #{fpn_forward.1} parent=67 // pred_fallthru
                _
            $region68: #{fpn_forward.1} parent=63 // pred_fallthru
              _
            // Predicated region
            $region69: #{fpn_forward.1} parent=63 // pred_check
              _
            $region70: #{fpn_forward.1} parent=63 // pred_check_branch
              %1168 = sbr.rel (0) target = $region72
            $region71: #{fpn_forward.1} parent=63 // pred_region
              %s1170 = ssub.s32 16, 1
              %s1171 = sshrl.u32 %s1157, 2
              // While loop
              $region73: #{fpn_forward.1} parent=71 // loop_pre_header
                _
              $region74: #{fpn_forward.1} parent=71 // loop_header
                %s1173 = sphi 0, %s1175
                %p1174 = scmp.ge.s32.totalorder %s1173, %s1171
                %s1178 = sphi 0, %s1191
                %s1179 = sphi %s1150, %s1194
                %s1180 = sphi %s1161, %s1195
              $region75: #{fpn_forward.1} parent=71 // loop_header_branch
                %1177 = sbr.rel (%p1174) target = $region79
              $region76: #{fpn_forward.1} parent=71 // loop_body
                %v1181 = vld [vmem:[%s1179] sm:%s1170]
                %1182 = vst [vmem:[%s1180] sm:%s1170] %v1181
                %v1183 = vld [vmem:[%s1179 + $0x4] sm:%s1170]
                %1184 = vst [vmem:[%s1180 + $0x4] sm:%s1170] %v1183
                %v1185 = vld [vmem:[%s1179 + $0x8] sm:%s1170]
                %1186 = vst [vmem:[%s1180 + $0x8] sm:%s1170] %v1185
                %v1187 = vld [vmem:[%s1179 + $0xc] sm:%s1170]
                %1188 = vst [vmem:[%s1180 + $0xc] sm:%s1170] %v1187
                %s1189 = sadd.s32 1, %s1178
                %p1190 = scmp.ge.s32.totalorder %s1189, %s1171
                %s1191 = scalar_select %p1190, 0, %s1189
                %s1192 = smul.u32 %s1191, 16
                %s1193 = smul.u32 %s1191, 16
                %s1194 = scalar_lea.vmem %s1150, %s1192 [#allocation2]
                %s1195 = scalar_lea.vmem %s1161, %s1193
              $region77: #{fpn_forward.1} parent=71 // loop_footer
                %s1175 = sadd.s32 %s1173, 1
              $region78: #{fpn_forward.1} parent=71 // loop_footer_branch
                %1172 = sbr.rel target = $region74
              $region79: #{fpn_forward.1} parent=71 // loop_exit
                _
              %s1196 = sshrl.u32 %s1157, 2
              %s1197 = sand.u32 %s1157, 3
              %s1198 = smul.u32 %s1196, 4
              %s1199 = smul.u32 4, %s1198
              %s1200 = scalar_lea.vmem %s1150, %s1199 [#allocation2]
              %s1201 = smul.u32 4, %s1198
              %s1202 = scalar_lea.vmem %s1161, %s1201
              // While loop
              $region80: #{fpn_forward.1} parent=71 // loop_pre_header
                _
              $region81: #{fpn_forward.1} parent=71 // loop_header
                %s1204 = sphi 0, %s1206
                %p1205 = scmp.ge.s32.totalorder %s1204, %s1197
                %s1209 = sphi 0, %s1216
                %s1210 = sphi %s1200, %s1219
                %s1211 = sphi %s1202, %s1220
              $region82: #{fpn_forward.1} parent=71 // loop_header_branch
                %1208 = sbr.rel (%p1205) target = $region86
              $region83: #{fpn_forward.1} parent=71 // loop_body
                %v1212 = vld [vmem:[%s1210] sm:%s1170]
                %1213 = vst [vmem:[%s1211] sm:%s1170] %v1212
                %s1214 = sadd.s32 1, %s1209
                %p1215 = scmp.ge.s32.totalorder %s1214, %s1197
                %s1216 = scalar_select %p1215, 0, %s1214
                %s1217 = smul.u32 %s1216, 4
                %s1218 = smul.u32 %s1216, 4
                %s1219 = scalar_lea.vmem %s1200, %s1217 [#allocation2]
                %s1220 = scalar_lea.vmem %s1202, %s1218
              $region84: #{fpn_forward.1} parent=71 // loop_footer
                %s1206 = sadd.s32 %s1204, 1
              $region85: #{fpn_forward.1} parent=71 // loop_footer_branch
                %1203 = sbr.rel target = $region81
              $region86: #{fpn_forward.1} parent=71 // loop_exit
                _
            $region72: #{fpn_forward.1} parent=63 // pred_fallthru
              _
          $region64: #{fpn_forward.1} parent=59 // pred_fallthru
            _
          %1275 = vnop
        $region60: #{fpn_forward.1} parent=55 // pred_fallthru
          _
      $region56: #{fpn_forward.1} parent=5 // pred_fallthru
        _
      %p1276 = scmp.le.s32.totalorder 2, %s15
      // Predicated region
      $region105: #{fpn_forward.1} parent=5 // pred_check
        %p1277 = pneg %p1276
      $region106: #{fpn_forward.1} parent=5 // pred_check_branch
        %1279 = sbr.rel (%p1277) target = $region108
      $region107: #{fpn_forward.1} parent=5 // pred_region
        %s1280 = ssub.s32 %s15, 2
        // Predicated region
        $region109: #{fpn_forward.1} parent=107 // pred_check
          %p1281 = pneg %p248
        $region110: #{fpn_forward.1} parent=107 // pred_check_branch
          %1283 = sbr.rel (%p1281) target = $region112
        $region111: #{fpn_forward.1} parent=107 // pred_region
          %s1284 = sand.u32 %s233, 1
          %s1285 = sand.u32 %s233, 1
          %s1286 = smul.addr %s1285, 16
          %s1287 = scalar_lea.vmem [#allocation2], %s1286
        $region112: #{fpn_forward.1} parent=107 // pred_fallthru
          _
      $region108: #{fpn_forward.1} parent=5 // pred_fallthru
        _
    $region6: #{fpn_forward.1} parent=1 // loop_footer
      %s19 = sadd.s32 1, %s15
    $region7: #{fpn_forward.1} parent=1 // loop_footer_branch
      %14 = sbr.rel target = $region3
    $region8: #{fpn_forward.1} parent=1 // loop_exit
      _

</llo_original>
